<compile_context>
chip_gen: v7x
topology: tpu7x:2x2x1
jax: 0.10.0
libtpu: 0.0.40
codegen_flags: <defaults>
</compile_context>

<pallas_src>
import jax
import jax.numpy as jnp
from jax.experimental import pallas as pl
from jax.experimental.pallas import tpu as pltpu

# ----------------------------- sizes (small) ---------------------------------
B = 2                     # batch
C_IN = 3                  # input channels (RGB, as in the PyTorch module)
H = W = 16                # spatial (scaled down from 224)
HWPIX = H * W             # pixels per image
NIMG = 2 * B              # img1 batch + img2 batch stacked
NROWS = NIMG * HWPIX      # total im2col columns in transposed layout (1024)
KC = 9 * C_IN             # im2col feature rows (27)
KC_PAD = 32               # padded; row KC holds the ones row for the bias fold
C_OUT = 8                 # conv channels of the synthetic backbone
FEAT = 128                # backbone out_features (scaled down from 1000)
H1 = 128                  # head hidden 1 (scaled down from 1500)
H2 = 128                  # head hidden 2 (scaled down from 1000)
OUT = 5                   # head output dim (matches nn.Linear(1000, 5))
OUT_PAD = 128             # lane-dense padded width of the final Linear / output
B_PAD = 8                 # output rows padded to a full sublane tile
PAIRWISE_EPS = 1e-6
BN_EPS = 1e-5

W1_OFF = C_OUT
W2_OFF = C_OUT + H1
W3_OFF = C_OUT + H1 + H2
WSTACK_ROWS = C_OUT + H1 + H2 + OUT_PAD      # 392


# ----------------------------- fused Pallas kernel ----------------------------
def siamese_kernel(patches_ref, pool_ref, convw_ref, ws_ref, vecs_ref, out_ref):
    """conv(+folded bias) -> ReLU -> GAP(matmul) -> FC -> shared head -> L2 dist."""
    # --- backbone conv, transposed layout ---
    # (C_OUT, KC_PAD) @ (KC_PAD, NROWS) -> (C_OUT, NROWS); bias folded via ones row.
    conv_t = jnp.dot(convw_ref[...], patches_ref[...],
                     preferred_element_type=jnp.float32)
    conv_t = jnp.maximum(conv_t, 0.0)                       # ReLU on 8 vregs only

    # --- global average pool: static (NIMG, NROWS) pool matrix, A @ B^T on MXU ---
    pooled = jax.lax.dot_general(
        pool_ref[...], conv_t,
        dimension_numbers=(((1,), (1,)), ((), ())),
        preferred_element_type=jnp.float32)                 # (NIMG, C_OUT)

    # --- backbone FC ---
    fcw = ws_ref[0:C_OUT, :]                                # (C_OUT, FEAT)
    fc_b = vecs_ref[0:1, :]
    feat = jnp.dot(pooled, fcw, preferred_element_type=jnp.float32) + fc_b

    # --- head: run ONCE on the stacked (2B, FEAT) rows ---
    # Dropout(0.5) -> identity in eval mode; BatchNorm1d folded to scale/shift.
    # TODO(synk): train-mode dropout omitted (eval-mode forward).
    w1 = ws_ref[W1_OFF:W1_OFF + H1, :]
    w2 = ws_ref[W2_OFF:W2_OFF + H2, :]
    w3 = ws_ref[W3_OFF:W3_OFF + OUT_PAD, :]
    b1 = vecs_ref[1:2, :]; s1 = vecs_ref[2:3, :]; t1 = vecs_ref[3:4, :]
    b2 = vecs_ref[4:5, :]; s2 = vecs_ref[5:6, :]; t2 = vecs_ref[6:7, :]
    b3 = vecs_ref[7:8, :]

    h = jnp.dot(feat, w1, preferred_element_type=jnp.float32) + b1
    h = jnp.maximum(h * s1 + t1, 0.0)                       # BN (folded) + ReLU
    h = jnp.dot(h, w2, preferred_element_type=jnp.float32) + b2
    h = jnp.maximum(h * s2 + t2, 0.0)
    o = jnp.dot(h, w3, preferred_element_type=jnp.float32) + b3
    o = jnp.maximum(o, 0.0)                                 # final ReLU, (NIMG, OUT_PAD)

    # --- pairwise L2 distance (torch eps semantics, real OUT features only) ---
    o1 = o[:B]                                              # img1 outputs
    o2 = o[B:NIMG]                                          # img2 outputs
    lane = jax.lax.broadcasted_iota(jnp.int32, (B, OUT_PAD), 1)
    d = jnp.where(lane < OUT, (o1 - o2) + PAIRWISE_EPS, 0.0)
    d = jnp.concatenate(
        [d, jnp.zeros((B_PAD - B, OUT_PAD), jnp.float32)], axis=0)  # full tile
    dist = jnp.sqrt(jnp.sum(d * d, axis=-1, keepdims=True))         # (B_PAD, 1)
    # Lane-dense, unmasked full-vreg store (distance broadcast across lanes).
    out_ref[...] = jnp.broadcast_to(dist, (B_PAD, OUT_PAD))


# ----------------------------- pallas_call wrapper -----------------------------
def siamese_pallas(patches_t, kern):
    args = (patches_t, kern["pool"], kern["convw"], kern["wstack"], kern["vecs"])
    vmem = pl.BlockSpec(memory_space=pltpu.MemorySpace.VMEM)
    flops = 2 * (C_OUT * KC_PAD * NROWS      # conv matmul
                 + NIMG * NROWS * C_OUT      # GAP matmul
                 + NIMG * C_OUT * FEAT       # backbone FC
                 + NIMG * FEAT * H1          # head L1
                 + NIMG * H1 * H2            # head L2
                 + NIMG * H2 * OUT_PAD)      # head L3
    bytes_accessed = sum(int(a.size) * 4 for a in args) + B_PAD * OUT_PAD * 4
    return pl.pallas_call(
        siamese_kernel,
        out_shape=jax.ShapeDtypeStruct((B_PAD, OUT_PAD), jnp.float32),
        in_specs=[vmem] * len(args),
        out_specs=vmem,
        cost_estimate=pl.CostEstimate(flops=flops, transcendentals=B_PAD,
                                      bytes_accessed=bytes_accessed),
    )(*args)


# ----------------------------- parameters --------------------------------------
def make_params(key):
    ks = jax.random.split(key, 18)

    def normal(k, shape, scale):
        return (scale * jax.random.normal(k, shape)).astype(jnp.float32)

    def bn_fold(kg, kb, km, kv, dim):
        gamma = 1.0 + 0.1 * jax.random.normal(kg, (dim,))
        beta = 0.1 * jax.random.normal(kb, (dim,))
        r_mean = 0.1 * jax.random.normal(km, (dim,))
        r_var = 0.5 + jnp.abs(jax.random.normal(kv, (dim,)))
        scale = gamma / jnp.sqrt(r_var + BN_EPS)
        shift = beta - r_mean * scale
        return scale.astype(jnp.float32), shift.astype(jnp.float32)

    raw = {}
    # synthetic backbone (stands in for pretrained resnet18)
    raw["conv_w"] = normal(ks[0], (3, 3, C_IN, C_OUT), 0.2)   # (kh, kw, cin, cout)
    raw["conv_b"] = normal(ks[1], (C_OUT,), 0.05)
    raw["fc_w"] = normal(ks[2], (C_OUT, FEAT), 0.2)
    raw["fc_b"] = normal(ks[3], (FEAT,), 0.05)
    # head: Linear(FEAT,H1) BN ReLU Linear(H1,H2) BN ReLU Linear(H2,OUT) ReLU
    raw["w1"] = normal(ks[4], (FEAT, H1), 0.15)
    raw["b1"] = normal(ks[5], (H1,), 0.05)
    raw["s1"], raw["t1"] = bn_fold(ks[6], ks[7], ks[8], ks[9], H1)
    raw["w2"] = normal(ks[10], (H1, H2), 0.15)
    raw["b2"] = normal(ks[11], (H2,), 0.05)
    raw["s2"], raw["t2"] = bn_fold(ks[12], ks[13], ks[14], ks[15], H2)
    raw["w3"] = normal(ks[16], (H2, OUT), 0.15)
    raw["b3"] = normal(ks[17], (OUT,), 0.05)

    # ---- kernel-layout params ----
    # conv weights transposed to (C_OUT, KC), padded to 32 lanes, bias folded at col KC
    cw = raw["conv_w"].reshape(KC, C_OUT).T                  # (C_OUT, KC)
    cw = jnp.pad(cw, ((0, 0), (0, KC_PAD - KC)))             # (C_OUT, KC_PAD)
    cw = cw.at[:, KC].set(raw["conv_b"])

    def row128(v):
        v = v.reshape(1, -1)
        return jnp.pad(v, ((0, 0), (0, 128 - v.shape[1])))

    vecs = jnp.concatenate(
        [row128(raw["fc_b"]), row128(raw["b1"]), row128(raw["s1"]), row128(raw["t1"]),
         row128(raw["b2"]), row128(raw["s2"]), row128(raw["t2"]), row128(raw["b3"])],
        axis=0)                                              # (8, 128) param slab

    w3p = jnp.pad(raw["w3"], ((0, 0), (0, OUT_PAD - OUT)))   # lane-dense final Linear
    wstack = jnp.concatenate([raw["fc_w"], raw["w1"], raw["w2"], w3p],
                             axis=0)                         # (392, 128) weight slab

    # Static block-diagonal global-average-pool matrix (precomputed, 16 KB).
    seg = jnp.repeat(jnp.arange(NIMG, dtype=jnp.int32), HWPIX)
    pool = (jnp.arange(NIMG, dtype=jnp.int32)[:, None] == seg[None, :])
    pool = pool.astype(jnp.float32) * (1.0 / HWPIX)          # (NIMG, NROWS)

    kern = {"convw": cw, "wstack": wstack, "vecs": vecs, "pool": pool}
    return raw, kern


# ----------------------------- forward ------------------------------------------
@jax.jit
def siamese_forward(img1, img2, kern):
    """img1, img2: [B, C, H, W] (NCHW).  Returns pairwise distance [B]."""
    x = jnp.concatenate([img1, img2], axis=0)                # (NIMG, C, H, W)
    xt = jnp.transpose(x, (1, 0, 2, 3))                      # (C, NIMG, H, W)
    xp = jnp.pad(xt, ((0, 0), (0, 0), (1, 1), (1, 1)))       # same-pad spatial
    # transposed im2col: rows = (tap, channel), columns = (image, pixel)
    taps = [xp[:, :, kh:kh + H, kw:kw + W].reshape(C_IN, NROWS)
            for kh in range(3) for kw in range(3)]
    patches_t = jnp.concatenate(
        taps + [jnp.ones((1, NROWS), jnp.float32),                     # bias row
                jnp.zeros((KC_PAD - KC - 1, NROWS), jnp.float32)],     # pad rows
        axis=0)                                              # (KC_PAD, NROWS)
    out = siamese_pallas(patches_t, kern)                    # (B_PAD, OUT_PAD) slab
    return out[:B, 0]                                        # [B]


# ----------------------------- pure-JAX reference --------------------------------
def siamese_reference(img1, img2, raw):
    x = jnp.concatenate([img1, img2], axis=0)                # (NIMG, C, H, W)
    x = jnp.transpose(x, (0, 2, 3, 1))                       # NHWC
    xp = jnp.pad(x, ((0, 0), (1, 1), (1, 1), (0, 0)))
    taps = [xp[:, kh:kh + H, kw:kw + W, :] for kh in range(3) for kw in range(3)]
    patches = jnp.concatenate(taps, axis=-1).reshape(NIMG * HWPIX, KC)
    conv = jnp.maximum(patches @ raw["conv_w"].reshape(KC, C_OUT) + raw["conv_b"], 0.0)
    pooled = conv.reshape(NIMG, HWPIX, C_OUT).mean(axis=1)
    feat = pooled @ raw["fc_w"] + raw["fc_b"]
    h = feat @ raw["w1"] + raw["b1"]
    h = jnp.maximum(h * raw["s1"] + raw["t1"], 0.0)
    h = h @ raw["w2"] + raw["b2"]
    h = jnp.maximum(h * raw["s2"] + raw["t2"], 0.0)
    o = jnp.maximum(h @ raw["w3"] + raw["b3"], 0.0)          # (NIMG, OUT)
    d = o[:B] - o[B:] + PAIRWISE_EPS
    return jnp.sqrt(jnp.sum(d * d, axis=-1))                 # [B]


if __name__ == "__main__":
    key = jax.random.PRNGKey(0)
    k_params, k_i1, k_i2 = jax.random.split(key, 3)
    raw, kern = make_params(k_params)
    img1 = jax.random.normal(k_i1, (B, C_IN, H, W), dtype=jnp.float32)
    img2 = jax.random.normal(k_i2, (B, C_IN, H, W), dtype=jnp.float32)

    out = siamese_forward(img1, img2, kern)
    out = jax.block_until_ready(out)
    assert out.shape == (B,), out.shape
    assert bool(jnp.all(jnp.isfinite(out)))

    ref = siamese_reference(img1, img2, raw)
    assert bool(jnp.allclose(out, ref, rtol=5e-2, atol=5e-2)), (out, ref)
    print("KERNEL_OK")
</pallas_src>

<mosaic_0001>
module attributes {stable_mosaic.version = 11 : i64} {
  func.func @siamese_kernel(%arg0: memref<32x1024xf32, #tpu.memory_space<vmem>>, %arg1: memref<4x1024xf32, #tpu.memory_space<vmem>>, %arg2: memref<8x32xf32, #tpu.memory_space<vmem>>, %arg3: memref<392x128xf32, #tpu.memory_space<vmem>>, %arg4: memref<8x128xf32, #tpu.memory_space<vmem>>, %arg5: memref<8x128xf32, #tpu.memory_space<vmem>>) attributes {dimension_semantics = [], scalar_prefetch = 0 : i64, scratch_operands = 0 : i64, tpu.core_type = #tpu.core_type<tc>} {
    %c0 = arith.constant 0 : index
    %c0_0 = arith.constant 0 : index
    %0 = vector.load %arg2[%c0, %c0_0] : memref<8x32xf32, #tpu.memory_space<vmem>>, vector<8x32xf32>
    %c0_1 = arith.constant 0 : index
    %c0_2 = arith.constant 0 : index
    %1 = vector.load %arg0[%c0_1, %c0_2] : memref<32x1024xf32, #tpu.memory_space<vmem>>, vector<32x1024xf32>
    %cst = arith.constant dense<0.000000e+00> : vector<8x1024xf32>
    %2 = tpu.matmul %0, %1, %cst {dimension_numbers = #tpu.dot_dimension_numbers<[1], [0], [0], [1], [0, 0, 1, 1], [], []>} : vector<8x32xf32>, vector<32x1024xf32>, vector<8x1024xf32> -> vector<8x1024xf32>
    %cst_3 = arith.constant 0.000000e+00 : f32
    %3 = vector.broadcast %cst_3 : f32 to vector<8x1024xf32>
    %4 = arith.maximumf %2, %3 : vector<8x1024xf32>
    %c0_4 = arith.constant 0 : index
    %c0_5 = arith.constant 0 : index
    %5 = vector.load %arg1[%c0_4, %c0_5] : memref<4x1024xf32, #tpu.memory_space<vmem>>, vector<4x1024xf32>
    %cst_6 = arith.constant dense<0.000000e+00> : vector<4x8xf32>
    %6 = tpu.matmul %5, %4, %cst_6 {dimension_numbers = #tpu.dot_dimension_numbers<[1], [1], [0], [0], [0, 0, 1, 0], [], []>} : vector<4x1024xf32>, vector<8x1024xf32>, vector<4x8xf32> -> vector<4x8xf32>
    %c0_7 = arith.constant 0 : index
    %c0_8 = arith.constant 0 : index
    %7 = vector.load %arg3[%c0_7, %c0_8] : memref<392x128xf32, #tpu.memory_space<vmem>>, vector<8x128xf32>
    %c0_9 = arith.constant 0 : index
    %c0_10 = arith.constant 0 : index
    %8 = vector.load %arg4[%c0_9, %c0_10] : memref<8x128xf32, #tpu.memory_space<vmem>>, vector<1x128xf32>
    %cst_11 = arith.constant dense<0.000000e+00> : vector<4x128xf32>
    %9 = tpu.matmul %6, %7, %cst_11 {dimension_numbers = #tpu.dot_dimension_numbers<[1], [0], [0], [1], [0, 0, 1, 1], [], []>} : vector<4x8xf32>, vector<8x128xf32>, vector<4x128xf32> -> vector<4x128xf32>
    %10 = vector.broadcast %8 : vector<1x128xf32> to vector<4x128xf32>
    %11 = arith.addf %9, %10 : vector<4x128xf32>
    %c8 = arith.constant 8 : index
    %c0_12 = arith.constant 0 : index
    %12 = vector.load %arg3[%c8, %c0_12] : memref<392x128xf32, #tpu.memory_space<vmem>>, vector<128x128xf32>
    %c136 = arith.constant 136 : index
    %c0_13 = arith.constant 0 : index
    %13 = vector.load %arg3[%c136, %c0_13] : memref<392x128xf32, #tpu.memory_space<vmem>>, vector<128x128xf32>
    %c264 = arith.constant 264 : index
    %c0_14 = arith.constant 0 : index
    %14 = vector.load %arg3[%c264, %c0_14] : memref<392x128xf32, #tpu.memory_space<vmem>>, vector<128x128xf32>
    %c1 = arith.constant 1 : index
    %c0_15 = arith.constant 0 : index
    %15 = vector.load %arg4[%c1, %c0_15] : memref<8x128xf32, #tpu.memory_space<vmem>>, vector<1x128xf32>
    %c2 = arith.constant 2 : index
    %c0_16 = arith.constant 0 : index
    %16 = vector.load %arg4[%c2, %c0_16] : memref<8x128xf32, #tpu.memory_space<vmem>>, vector<1x128xf32>
    %c3 = arith.constant 3 : index
    %c0_17 = arith.constant 0 : index
    %17 = vector.load %arg4[%c3, %c0_17] : memref<8x128xf32, #tpu.memory_space<vmem>>, vector<1x128xf32>
    %c4 = arith.constant 4 : index
    %c0_18 = arith.constant 0 : index
    %18 = vector.load %arg4[%c4, %c0_18] : memref<8x128xf32, #tpu.memory_space<vmem>>, vector<1x128xf32>
    %c5 = arith.constant 5 : index
    %c0_19 = arith.constant 0 : index
    %19 = vector.load %arg4[%c5, %c0_19] : memref<8x128xf32, #tpu.memory_space<vmem>>, vector<1x128xf32>
    %c6 = arith.constant 6 : index
    %c0_20 = arith.constant 0 : index
    %20 = vector.load %arg4[%c6, %c0_20] : memref<8x128xf32, #tpu.memory_space<vmem>>, vector<1x128xf32>
    %c7 = arith.constant 7 : index
    %c0_21 = arith.constant 0 : index
    %21 = vector.load %arg4[%c7, %c0_21] : memref<8x128xf32, #tpu.memory_space<vmem>>, vector<1x128xf32>
    %cst_22 = arith.constant dense<0.000000e+00> : vector<4x128xf32>
    %22 = tpu.matmul %11, %12, %cst_22 {dimension_numbers = #tpu.dot_dimension_numbers<[1], [0], [0], [1], [0, 0, 1, 1], [], []>} : vector<4x128xf32>, vector<128x128xf32>, vector<4x128xf32> -> vector<4x128xf32>
    %23 = vector.broadcast %15 : vector<1x128xf32> to vector<4x128xf32>
    %24 = arith.addf %22, %23 : vector<4x128xf32>
    %25 = vector.broadcast %16 : vector<1x128xf32> to vector<4x128xf32>
    %26 = arith.mulf %24, %25 : vector<4x128xf32>
    %27 = vector.broadcast %17 : vector<1x128xf32> to vector<4x128xf32>
    %28 = arith.addf %26, %27 : vector<4x128xf32>
    %cst_23 = arith.constant 0.000000e+00 : f32
    %29 = vector.broadcast %cst_23 : f32 to vector<4x128xf32>
    %30 = arith.maximumf %28, %29 : vector<4x128xf32>
    %cst_24 = arith.constant dense<0.000000e+00> : vector<4x128xf32>
    %31 = tpu.matmul %30, %13, %cst_24 {dimension_numbers = #tpu.dot_dimension_numbers<[1], [0], [0], [1], [0, 0, 1, 1], [], []>} : vector<4x128xf32>, vector<128x128xf32>, vector<4x128xf32> -> vector<4x128xf32>
    %32 = vector.broadcast %18 : vector<1x128xf32> to vector<4x128xf32>
    %33 = arith.addf %31, %32 : vector<4x128xf32>
    %34 = vector.broadcast %19 : vector<1x128xf32> to vector<4x128xf32>
    %35 = arith.mulf %33, %34 : vector<4x128xf32>
    %36 = vector.broadcast %20 : vector<1x128xf32> to vector<4x128xf32>
    %37 = arith.addf %35, %36 : vector<4x128xf32>
    %cst_25 = arith.constant 0.000000e+00 : f32
    %38 = vector.broadcast %cst_25 : f32 to vector<4x128xf32>
    %39 = arith.maximumf %37, %38 : vector<4x128xf32>
    %cst_26 = arith.constant dense<0.000000e+00> : vector<4x128xf32>
    %40 = tpu.matmul %39, %14, %cst_26 {dimension_numbers = #tpu.dot_dimension_numbers<[1], [0], [0], [1], [0, 0, 1, 1], [], []>} : vector<4x128xf32>, vector<128x128xf32>, vector<4x128xf32> -> vector<4x128xf32>
    %41 = vector.broadcast %21 : vector<1x128xf32> to vector<4x128xf32>
    %42 = arith.addf %40, %41 : vector<4x128xf32>
    %cst_27 = arith.constant 0.000000e+00 : f32
    %43 = vector.broadcast %cst_27 : f32 to vector<4x128xf32>
    %44 = arith.maximumf %42, %43 : vector<4x128xf32>
    %45 = vector.extract_strided_slice %44 {offsets = [0, 0], sizes = [2, 128], strides = [1, 1]} : vector<4x128xf32> to vector<2x128xf32>
    %46 = vector.extract_strided_slice %44 {offsets = [2, 0], sizes = [2, 128], strides = [1, 1]} : vector<4x128xf32> to vector<2x128xf32>
    %47 = tpu.iota {dimensions = array<i32: 1>} : vector<2x128xi32>
    %c5_i32 = arith.constant 5 : i32
    %48 = vector.broadcast %c5_i32 : i32 to vector<2x128xi32>
    %49 = arith.cmpi slt, %47, %48 : vector<2x128xi32>
    %50 = arith.subf %45, %46 : vector<2x128xf32>
    %cst_28 = arith.constant 9.99999997E-7 : f32
    %51 = vector.broadcast %cst_28 : f32 to vector<2x128xf32>
    %52 = arith.addf %50, %51 : vector<2x128xf32>
    %cst_29 = arith.constant 0.000000e+00 : f32
    %53 = vector.broadcast %cst_29 : f32 to vector<2x128xf32>
    %54 = arith.select %49, %52, %53 : vector<2x128xi1>, vector<2x128xf32>
    %cst_30 = arith.constant 0.000000e+00 : f32
    %55 = vector.broadcast %cst_30 : f32 to vector<6x128xf32>
    %56 = tpu.concatenate %54, %55 in 0 : vector<2x128xf32>, vector<6x128xf32> -> vector<8x128xf32>
    %57 = arith.mulf %56, %56 : vector<8x128xf32>
    %cst_31 = arith.constant dense<0.000000e+00> : vector<8xf32>
    %58 = vector.multi_reduction <add>, %57, %cst_31 [1] : vector<8x128xf32> to vector<8xf32>
    %59 = vector.shape_cast %58 : vector<8xf32> to vector<8x1xf32>
    %60 = math.sqrt %59 : vector<8x1xf32>
    %61 = vector.shape_cast %60 : vector<8x1xf32> to vector<8x1xf32>
    %62 = vector.broadcast %61 : vector<8x1xf32> to vector<8x128xf32>
    %c0_32 = arith.constant 0 : index
    %c0_33 = arith.constant 0 : index
    %63 = vector.load %arg5[%c0_32, %c0_33] : memref<8x128xf32, #tpu.memory_space<vmem>>, vector<8x128xf32>
    tpu.vector_store %arg5[%c0_32, %c0_33], %62 {strides = array<i32>} : memref<8x128xf32, #tpu.memory_space<vmem>>, vector<8x128xf32>,
    return
  }
}

</mosaic_0001>

<llo_original>
// kernel: siamese_forward.1
$region0: #{siamese_forward.1}
  #allocation0 [shape = 'u32[]', space=smem, size = 0x4, offset = 0x4, fixed_abs, tag = 'smem constant byte address 0x4 - core index']
  #allocation1 [shape = 'u32[144,128]{1,0:T(1,128)}', space=vmem, size = 0x12000, scoped, tag = 'internal scratch']
  %s0 = inlined_call_operand.vmem [shape: f32[32,1024], index: 0, kind: input, shape index: {}]
  %s1 = inlined_call_operand.vmem [shape: f32[4,1024], index: 1, kind: input, shape index: {}]
  %s2 = inlined_call_operand.vmem [shape: f32[8,32], index: 2, kind: input, shape index: {}]
  %s3 = inlined_call_operand.vmem [shape: f32[392,128], index: 3, kind: input, shape index: {}]
  %s4 = inlined_call_operand.vmem [shape: f32[8,128], index: 4, kind: input, shape index: {}]
  %s5 = inlined_call_operand.vmem [shape: f32[8,128], index: 5, kind: output, shape index: {}]
  %s6 = sld [smem:[#allocation0]]
  $region30: #{siamese_forward.1} parent=0
    _
  %s8 = ssub.s32 1, %s6
  %s9 = scalar_select 0, %s8, %s6
  // Predicated region
  $region2: #{siamese_forward.1} parent=0 // pred_check
    _
  $region3: #{siamese_forward.1} parent=0 // pred_check_branch
    %11 = sbr.rel (0) target = $region5
  $region4: #{siamese_forward.1} parent=0 // pred_region
    _
  $region5: #{siamese_forward.1} parent=0 // pred_fallthru
    _
  // Predicated region
  $region6: #{siamese_forward.1} parent=0 // pred_check
    _
  $region7: #{siamese_forward.1} parent=0 // pred_check_branch
    %13 = sbr.rel (0) target = $region9
  $region8: #{siamese_forward.1} parent=0 // pred_region
    _
  $region9: #{siamese_forward.1} parent=0 // pred_fallthru
    _
  // Predicated region
  $region10: #{siamese_forward.1} parent=0 // pred_check
    _
  $region11: #{siamese_forward.1} parent=0 // pred_check_branch
    %15 = sbr.rel (0) target = $region13
  $region12: #{siamese_forward.1} parent=0 // pred_region
    _
  $region13: #{siamese_forward.1} parent=0 // pred_fallthru
    _
  // Predicated region
  $region14: #{siamese_forward.1} parent=0 // pred_check
    _
  $region15: #{siamese_forward.1} parent=0 // pred_check_branch
    %17 = sbr.rel (0) target = $region17
  $region16: #{siamese_forward.1} parent=0 // pred_region
    _
  $region17: #{siamese_forward.1} parent=0 // pred_fallthru
    _
  // Predicated region
  $region18: #{siamese_forward.1} parent=0 // pred_check
    _
  $region19: #{siamese_forward.1} parent=0 // pred_check_branch
    %19 = sbr.rel (0) target = $region21
  $region20: #{siamese_forward.1} parent=0 // pred_region
    _
  $region21: #{siamese_forward.1} parent=0 // pred_fallthru
    _
  %v20 = vld [vmem:[%s2] sm:$0xff]
  %v21 = vld [vmem:[%s0] sm:$0xff]
  %v22 = vld [vmem:[%s0 + $0x8] sm:$0xff]
  %v23 = vld [vmem:[%s0 + $0x10] sm:$0xff]
  %v24 = vld [vmem:[%s0 + $0x18] sm:$0xff]
  %v25 = vld [vmem:[%s0 + $0x20] sm:$0xff]
  %v26 = vld [vmem:[%s0 + $0x28] sm:$0xff]
  %v27 = vld [vmem:[%s0 + $0x30] sm:$0xff]
  %v28 = vld [vmem:[%s0 + $0x38] sm:$0xff]
  %v29 = vld [vmem:[%s0 + $0x40] sm:$0xff]
  %v30 = vld [vmem:[%s0 + $0x48] sm:$0xff]
  %v31 = vld [vmem:[%s0 + $0x50] sm:$0xff]
  %v32 = vld [vmem:[%s0 + $0x58] sm:$0xff]
  %v33 = vld [vmem:[%s0 + $0x60] sm:$0xff]
  %v34 = vld [vmem:[%s0 + $0x68] sm:$0xff]
  %v35 = vld [vmem:[%s0 + $0x70] sm:$0xff]
  %v36 = vld [vmem:[%s0 + $0x78] sm:$0xff]
  %v37 = vld [vmem:[%s0 + $0x80] sm:$0xff]
  %v38 = vld [vmem:[%s0 + $0x88] sm:$0xff]
  %v39 = vld [vmem:[%s0 + $0x90] sm:$0xff]
  %v40 = vld [vmem:[%s0 + $0x98] sm:$0xff]
  %v41 = vld [vmem:[%s0 + $0xa0] sm:$0xff]
  %v42 = vld [vmem:[%s0 + $0xa8] sm:$0xff]
  %v43 = vld [vmem:[%s0 + $0xb0] sm:$0xff]
  %v44 = vld [vmem:[%s0 + $0xb8] sm:$0xff]
  %v45 = vld [vmem:[%s0 + $0xc0] sm:$0xff]
  %v46 = vld [vmem:[%s0 + $0xc8] sm:$0xff]
  %v47 = vld [vmem:[%s0 + $0xd0] sm:$0xff]
  %v48 = vld [vmem:[%s0 + $0xd8] sm:$0xff]
  %v49 = vld [vmem:[%s0 + $0xe0] sm:$0xff]
  %v50 = vld [vmem:[%s0 + $0xe8] sm:$0xff]
  %v51 = vld [vmem:[%s0 + $0xf0] sm:$0xff]
  %v52 = vld [vmem:[%s0 + $0xf8] sm:$0xff]
  %vm53 = vcmask 261120
  %v55 = vsel %vm53, %v20, 0
  %57 = vmatprep.subr.mxu0 %v22
  %58 = vmatpush1.msra.mxu0 %v21
  %59 = vmatprep.subr.mxu0 %v30
  %60 = vmatpush1.msra.mxu0 %v29
  %61 = vmatprep.subr.mxu0 %v38
  %62 = vmatpush1.msra.mxu0 %v37
  %63 = vmatprep.subr.mxu0 %v46
  %64 = vmatpush1.msra.mxu0 %v45
  %65 = vmatprep.subr.mxu0 0.0
  %66 = vmatpush1.msra.mxu0 0.0
  %67 = vmatprep.subr.mxu0 0.0
  %68 = vmatpush1.msra.mxu0 0.0
  %69 = vmatprep.subr.mxu0 0.0
  %70 = vmatpush1.msra.mxu0 0.0
  %71 = vmatprep.subr.mxu0 0.0
  %72 = vmatpush1.msra.mxu0 0.0
  %73 = vmatprep.subr.mxu0 0.0
  %74 = vmatpush1.msra.mxu0 0.0
  %75 = vmatprep.subr.mxu0 0.0
  %76 = vmatpush1.msra.mxu0 0.0
  %77 = vmatprep.subr.mxu0 0.0
  %78 = vmatpush1.msra.mxu0 0.0
  %79 = vmatprep.subr.mxu0 0.0
  %80 = vmatpush1.msra.mxu0 0.0
  %81 = vmatprep.subr.mxu0 0.0
  %82 = vmatpush1.msra.mxu0 0.0
  %83 = vmatprep.subr.mxu0 0.0
  %84 = vmatpush1.msra.mxu0 0.0
  %85 = vmatprep.subr.mxu0 0.0
  %86 = vmatpush1.msra.mxu0 0.0
  %87 = vmatprep.subr.mxu0 0.0
  %88 = vmatpush1.msra.mxu0 0.0
  %89 = vmatprep.subr.mxu0 0.0
  %90 = vmatpush1.msra.mxu0 0.0
  %91 = vmatprep.subr.mxu0 0.0
  %92 = vmatpush1.msra.mxu0 0.0
  %93 = vmatprep.subr.mxu0 0.0
  %94 = vmatpush1.msra.mxu0 0.0
  %95 = vmatprep.subr.mxu0 0.0
  %96 = vmatpush1.msra.mxu0 0.0
  %97 = vmatprep.subr.mxu0 0.0
  %98 = vmatpush1.msra.mxu0 0.0
  %99 = vmatprep.subr.mxu0 0.0
  %100 = vmatpush1.msra.mxu0 0.0
  %101 = vmatprep.subr.mxu0 0.0
  %102 = vmatpush1.msra.mxu0 0.0
  %103 = vmatprep.subr.mxu0 0.0
  %104 = vmatpush1.msra.mxu0 0.0
  %105 = vmatprep.subr.mxu0 0.0
  %106 = vmatpush1.msra.mxu0 0.0
  %107 = vmatprep.subr.mxu0 0.0
  %108 = vmatpush1.msra.mxu0 0.0
  %109 = vmatprep.subr.mxu0 0.0
  %110 = vmatpush1.msra.mxu0 0.0
  %111 = vmatprep.subr.mxu0 0.0
  %112 = vmatpush1.msra.mxu0 0.0
  %113 = vmatprep.subr.mxu0 0.0
  %114 = vmatpush1.msra.mxu0 0.0
  %115 = vmatprep.subr.mxu0 0.0
  %116 = vmatpush1.msra.mxu0 0.0
  %117 = vmatprep.subr.mxu0 0.0
  %118 = vmatpush1.msra.mxu0 0.0
  %119 = vmatprep.subr.mxu0 0.0
  %120 = vmatpush1.msra.mxu0 0.0
  %121 = vmatprep.mubr.f32.mxu0 0.0
  %122 = vmatmul.mubr.f32.gmra.mrb[0].mxu0 %v55
  %v123 = vpop.f32.mrb[0].mxu0
  %v124 = vadd.f32 0.0, %v123
  %v125 = vpop.f32.mrb[0].mxu0
  %v126 = vadd.f32 0.0, %v125
  %127 = vdwg.mxu0
  %128 = vmatprep.subr.mxu0 %v24
  %129 = vmatpush1.msra.mxu0 %v23
  %130 = vmatprep.subr.mxu0 %v32
  %131 = vmatpush1.msra.mxu0 %v31
  %132 = vmatprep.subr.mxu0 %v40
  %133 = vmatpush1.msra.mxu0 %v39
  %134 = vmatprep.subr.mxu0 %v48
  %135 = vmatpush1.msra.mxu0 %v47
  %136 = vmatprep.subr.mxu0 0.0
  %137 = vmatpush1.msra.mxu0 0.0
  %138 = vmatprep.subr.mxu0 0.0
  %139 = vmatpush1.msra.mxu0 0.0
  %140 = vmatprep.subr.mxu0 0.0
  %141 = vmatpush1.msra.mxu0 0.0
  %142 = vmatprep.subr.mxu0 0.0
  %143 = vmatpush1.msra.mxu0 0.0
  %144 = vmatprep.subr.mxu0 0.0
  %145 = vmatpush1.msra.mxu0 0.0
  %146 = vmatprep.subr.mxu0 0.0
  %147 = vmatpush1.msra.mxu0 0.0
  %148 = vmatprep.subr.mxu0 0.0
  %149 = vmatpush1.msra.mxu0 0.0
  %150 = vmatprep.subr.mxu0 0.0
  %151 = vmatpush1.msra.mxu0 0.0
  %152 = vmatprep.subr.mxu0 0.0
  %153 = vmatpush1.msra.mxu0 0.0
  %154 = vmatprep.subr.mxu0 0.0
  %155 = vmatpush1.msra.mxu0 0.0
  %156 = vmatprep.subr.mxu0 0.0
  %157 = vmatpush1.msra.mxu0 0.0
  %158 = vmatprep.subr.mxu0 0.0
  %159 = vmatpush1.msra.mxu0 0.0
  %160 = vmatprep.subr.mxu0 0.0
  %161 = vmatpush1.msra.mxu0 0.0
  %162 = vmatprep.subr.mxu0 0.0
  %163 = vmatpush1.msra.mxu0 0.0
  %164 = vmatprep.subr.mxu0 0.0
  %165 = vmatpush1.msra.mxu0 0.0
  %166 = vmatprep.subr.mxu0 0.0
  %167 = vmatpush1.msra.mxu0 0.0
  %168 = vmatprep.subr.mxu0 0.0
  %169 = vmatpush1.msra.mxu0 0.0
  %170 = vmatprep.subr.mxu0 0.0
  %171 = vmatpush1.msra.mxu0 0.0
  %172 = vmatprep.subr.mxu0 0.0
  %173 = vmatpush1.msra.mxu0 0.0
  %174 = vmatprep.subr.mxu0 0.0
  %175 = vmatpush1.msra.mxu0 0.0
  %176 = vmatprep.subr.mxu0 0.0
  %177 = vmatpush1.msra.mxu0 0.0
  %178 = vmatprep.subr.mxu0 0.0
  %179 = vmatpush1.msra.mxu0 0.0
  %180 = vmatprep.subr.mxu0 0.0
  %181 = vmatpush1.msra.mxu0 0.0
  %182 = vmatprep.subr.mxu0 0.0
  %183 = vmatpush1.msra.mxu0 0.0
  %184 = vmatprep.subr.mxu0 0.0
  %185 = vmatpush1.msra.mxu0 0.0
  %186 = vmatprep.subr.mxu0 0.0
  %187 = vmatpush1.msra.mxu0 0.0
  %188 = vmatprep.subr.mxu0 0.0
  %189 = vmatpush1.msra.mxu0 0.0
  %190 = vmatprep.subr.mxu0 0.0
  %191 = vmatpush1.msra.mxu0 0.0
  %192 = vmatprep.mubr.f32.mxu0 0.0
  %193 = vmatmul.mubr.f32.gmra.mrb[0].mxu0 %v55
  %v194 = vpop.f32.mrb[0].mxu0
  %v195 = vadd.f32 0.0, %v194
  %v196 = vpop.f32.mrb[0].mxu0
  %v197 = vadd.f32 0.0, %v196
  %198 = vdwg.mxu0
  %199 = vmatprep.subr.mxu0 %v26
  %200 = vmatpush1.msra.mxu0 %v25
  %201 = vmatprep.subr.mxu0 %v34
  %202 = vmatpush1.msra.mxu0 %v33
  %203 = vmatprep.subr.mxu0 %v42
  %204 = vmatpush1.msra.mxu0 %v41
  %205 = vmatprep.subr.mxu0 %v50
  %206 = vmatpush1.msra.mxu0 %v49
  %207 = vmatprep.subr.mxu0 0.0
  %208 = vmatpush1.msra.mxu0 0.0
  %209 = vmatprep.subr.mxu0 0.0
  %210 = vmatpush1.msra.mxu0 0.0
  %211 = vmatprep.subr.mxu0 0.0
  %212 = vmatpush1.msra.mxu0 0.0
  %213 = vmatprep.subr.mxu0 0.0
  %214 = vmatpush1.msra.mxu0 0.0
  %215 = vmatprep.subr.mxu0 0.0
  %216 = vmatpush1.msra.mxu0 0.0
  %217 = vmatprep.subr.mxu0 0.0
  %218 = vmatpush1.msra.mxu0 0.0
  %219 = vmatprep.subr.mxu0 0.0
  %220 = vmatpush1.msra.mxu0 0.0
  %221 = vmatprep.subr.mxu0 0.0
  %222 = vmatpush1.msra.mxu0 0.0
  %223 = vmatprep.subr.mxu0 0.0
  %224 = vmatpush1.msra.mxu0 0.0
  %225 = vmatprep.subr.mxu0 0.0
  %226 = vmatpush1.msra.mxu0 0.0
  %227 = vmatprep.subr.mxu0 0.0
  %228 = vmatpush1.msra.mxu0 0.0
  %229 = vmatprep.subr.mxu0 0.0
  %230 = vmatpush1.msra.mxu0 0.0
  %231 = vmatprep.subr.mxu0 0.0
  %232 = vmatpush1.msra.mxu0 0.0
  %233 = vmatprep.subr.mxu0 0.0
  %234 = vmatpush1.msra.mxu0 0.0
  %235 = vmatprep.subr.mxu0 0.0
  %236 = vmatpush1.msra.mxu0 0.0
  %237 = vmatprep.subr.mxu0 0.0
  %238 = vmatpush1.msra.mxu0 0.0
  %239 = vmatprep.subr.mxu0 0.0
  %240 = vmatpush1.msra.mxu0 0.0
  %241 = vmatprep.subr.mxu0 0.0
  %242 = vmatpush1.msra.mxu0 0.0
  %243 = vmatprep.subr.mxu0 0.0
  %244 = vmatpush1.msra.mxu0 0.0
  %245 = vmatprep.subr.mxu0 0.0
  %246 = vmatpush1.msra.mxu0 0.0
  %247 = vmatprep.subr.mxu0 0.0
  %248 = vmatpush1.msra.mxu0 0.0
  %249 = vmatprep.subr.mxu0 0.0
  %250 = vmatpush1.msra.mxu0 0.0
  %251 = vmatprep.subr.mxu0 0.0
  %252 = vmatpush1.msra.mxu0 0.0
  %253 = vmatprep.subr.mxu0 0.0
  %254 = vmatpush1.msra.mxu0 0.0
  %255 = vmatprep.subr.mxu0 0.0
  %256 = vmatpush1.msra.mxu0 0.0
  %257 = vmatprep.subr.mxu0 0.0
  %258 = vmatpush1.msra.mxu0 0.0
  %259 = vmatprep.subr.mxu0 0.0
  %260 = vmatpush1.msra.mxu0 0.0
  %261 = vmatprep.subr.mxu0 0.0
  %262 = vmatpush1.msra.mxu0 0.0
  %263 = vmatprep.mubr.f32.mxu0 0.0
  %264 = vmatmul.mubr.f32.gmra.mrb[0].mxu0 %v55
  %v265 = vpop.f32.mrb[0].mxu0
  %v266 = vadd.f32 0.0, %v265
  %v267 = vpop.f32.mrb[0].mxu0
  %v268 = vadd.f32 0.0, %v267
  %269 = vdwg.mxu0
  %270 = vmatprep.subr.mxu0 %v28
  %271 = vmatpush1.msra.mxu0 %v27
  %272 = vmatprep.subr.mxu0 %v36
  %273 = vmatpush1.msra.mxu0 %v35
  %274 = vmatprep.subr.mxu0 %v44
  %275 = vmatpush1.msra.mxu0 %v43
  %276 = vmatprep.subr.mxu0 %v52
  %277 = vmatpush1.msra.mxu0 %v51
  %278 = vmatprep.subr.mxu0 0.0
  %279 = vmatpush1.msra.mxu0 0.0
  %280 = vmatprep.subr.mxu0 0.0
  %281 = vmatpush1.msra.mxu0 0.0
  %282 = vmatprep.subr.mxu0 0.0
  %283 = vmatpush1.msra.mxu0 0.0
  %284 = vmatprep.subr.mxu0 0.0
  %285 = vmatpush1.msra.mxu0 0.0
  %286 = vmatprep.subr.mxu0 0.0
  %287 = vmatpush1.msra.mxu0 0.0
  %288 = vmatprep.subr.mxu0 0.0
  %289 = vmatpush1.msra.mxu0 0.0
  %290 = vmatprep.subr.mxu0 0.0
  %291 = vmatpush1.msra.mxu0 0.0
  %292 = vmatprep.subr.mxu0 0.0
  %293 = vmatpush1.msra.mxu0 0.0
  %294 = vmatprep.subr.mxu0 0.0
  %295 = vmatpush1.msra.mxu0 0.0
  %296 = vmatprep.subr.mxu0 0.0
  %297 = vmatpush1.msra.mxu0 0.0
  %298 = vmatprep.subr.mxu0 0.0
  %299 = vmatpush1.msra.mxu0 0.0
  %300 = vmatprep.subr.mxu0 0.0
  %301 = vmatpush1.msra.mxu0 0.0
  %302 = vmatprep.subr.mxu0 0.0
  %303 = vmatpush1.msra.mxu0 0.0
  %304 = vmatprep.subr.mxu0 0.0
  %305 = vmatpush1.msra.mxu0 0.0
  %306 = vmatprep.subr.mxu0 0.0
  %307 = vmatpush1.msra.mxu0 0.0
  %308 = vmatprep.subr.mxu0 0.0
  %309 = vmatpush1.msra.mxu0 0.0
  %310 = vmatprep.subr.mxu0 0.0
  %311 = vmatpush1.msra.mxu0 0.0
  %312 = vmatprep.subr.mxu0 0.0
  %313 = vmatpush1.msra.mxu0 0.0
  %314 = vmatprep.subr.mxu0 0.0
  %315 = vmatpush1.msra.mxu0 0.0
  %316 = vmatprep.subr.mxu0 0.0
  %317 = vmatpush1.msra.mxu0 0.0
  %318 = vmatprep.subr.mxu0 0.0
  %319 = vmatpush1.msra.mxu0 0.0
  %320 = vmatprep.subr.mxu0 0.0
  %321 = vmatpush1.msra.mxu0 0.0
  %322 = vmatprep.subr.mxu0 0.0
  %323 = vmatpush1.msra.mxu0 0.0
  %324 = vmatprep.subr.mxu0 0.0
  %325 = vmatpush1.msra.mxu0 0.0
  %326 = vmatprep.subr.mxu0 0.0
  %327 = vmatpush1.msra.mxu0 0.0
  %328 = vmatprep.subr.mxu0 0.0
  %329 = vmatpush1.msra.mxu0 0.0
  %330 = vmatprep.subr.mxu0 0.0
  %331 = vmatpush1.msra.mxu0 0.0
  %332 = vmatprep.subr.mxu0 0.0
  %333 = vmatpush1.msra.mxu0 0.0
  %334 = vmatprep.mubr.f32.mxu0 0.0
  %335 = vmatmul.mubr.f32.gmra.mrb[0].mxu0 %v55
  %v336 = vpop.f32.mrb[0].mxu0
  %v337 = vadd.f32 0.0, %v336
  %v338 = vpop.f32.mrb[0].mxu0
  %v339 = vadd.f32 0.0, %v338
  %340 = vdwg.mxu0
  %v341 = vmax.f32 %v124, 0.0
  %v342 = vmax.f32 %v126, 0.0
  %v343 = vmax.f32 %v195, 0.0
  %v344 = vmax.f32 %v197, 0.0
  %v345 = vmax.f32 %v266, 0.0
  %v346 = vmax.f32 %v268, 0.0
  %v347 = vmax.f32 %v337, 0.0
  %v348 = vmax.f32 %v339, 0.0
  %v349 = vld [vmem:[%s1] sm:$0xff]
  %v350 = vld [vmem:[%s1 + $0x8] sm:$0xff]
  %v351 = vld [vmem:[%s1 + $0x10] sm:$0xff]
  %v352 = vld [vmem:[%s1 + $0x18] sm:$0xff]
  %v357 = vcombine.high %v349, %v349
  %v358 = vcombine.high %v350, %v350
  %v359 = vcombine.high %v351, %v351
  %v360 = vcombine.high %v352, %v352
  %365 = vmatprep.subr.mxu0 %v342
  %366 = vmatpush1.xpose.msra.mxu0 %v341
  %367 = vmatprep.subr.mxu0 0.0
  %368 = vmatpush1.xpose.msra.mxu0 0.0
  %369 = vmatprep.subr.mxu0 0.0
  %370 = vmatpush1.xpose.msra.mxu0 0.0
  %371 = vmatprep.subr.mxu0 0.0
  %372 = vmatpush1.xpose.msra.mxu0 0.0
  %373 = vmatprep.subr.mxu0 0.0
  %374 = vmatpush1.xpose.msra.mxu0 0.0
  %375 = vmatprep.subr.mxu0 0.0
  %376 = vmatpush1.xpose.msra.mxu0 0.0
  %377 = vmatprep.subr.mxu0 0.0
  %378 = vmatpush1.xpose.msra.mxu0 0.0
  %379 = vmatprep.subr.mxu0 0.0
  %380 = vmatpush1.xpose.msra.mxu0 0.0
  %381 = vmatprep.subr.mxu0 0.0
  %382 = vmatpush1.xpose.msra.mxu0 0.0
  %383 = vmatprep.subr.mxu0 0.0
  %384 = vmatpush1.xpose.msra.mxu0 0.0
  %385 = vmatprep.subr.mxu0 0.0
  %386 = vmatpush1.xpose.msra.mxu0 0.0
  %387 = vmatprep.subr.mxu0 0.0
  %388 = vmatpush1.xpose.msra.mxu0 0.0
  %389 = vmatprep.subr.mxu0 0.0
  %390 = vmatpush1.xpose.msra.mxu0 0.0
  %391 = vmatprep.subr.mxu0 0.0
  %392 = vmatpush1.xpose.msra.mxu0 0.0
  %393 = vmatprep.subr.mxu0 0.0
  %394 = vmatpush1.xpose.msra.mxu0 0.0
  %395 = vmatprep.subr.mxu0 0.0
  %396 = vmatpush1.xpose.msra.mxu0 0.0
  %397 = vmatprep.subr.mxu0 0.0
  %398 = vmatpush1.xpose.msra.mxu0 0.0
  %399 = vmatprep.subr.mxu0 0.0
  %400 = vmatpush1.xpose.msra.mxu0 0.0
  %401 = vmatprep.subr.mxu0 0.0
  %402 = vmatpush1.xpose.msra.mxu0 0.0
  %403 = vmatprep.subr.mxu0 0.0
  %404 = vmatpush1.xpose.msra.mxu0 0.0
  %405 = vmatprep.subr.mxu0 0.0
  %406 = vmatpush1.xpose.msra.mxu0 0.0
  %407 = vmatprep.subr.mxu0 0.0
  %408 = vmatpush1.xpose.msra.mxu0 0.0
  %409 = vmatprep.subr.mxu0 0.0
  %410 = vmatpush1.xpose.msra.mxu0 0.0
  %411 = vmatprep.subr.mxu0 0.0
  %412 = vmatpush1.xpose.msra.mxu0 0.0
  %413 = vmatprep.subr.mxu0 0.0
  %414 = vmatpush1.xpose.msra.mxu0 0.0
  %415 = vmatprep.subr.mxu0 0.0
  %416 = vmatpush1.xpose.msra.mxu0 0.0
  %417 = vmatprep.subr.mxu0 0.0
  %418 = vmatpush1.xpose.msra.mxu0 0.0
  %419 = vmatprep.subr.mxu0 0.0
  %420 = vmatpush1.xpose.msra.mxu0 0.0
  %421 = vmatprep.subr.mxu0 0.0
  %422 = vmatpush1.xpose.msra.mxu0 0.0
  %423 = vmatprep.subr.mxu0 0.0
  %424 = vmatpush1.xpose.msra.mxu0 0.0
  %425 = vmatprep.subr.mxu0 0.0
  %426 = vmatpush1.xpose.msra.mxu0 0.0
  %427 = vmatprep.subr.mxu0 0.0
  %428 = vmatpush1.xpose.msra.mxu0 0.0
  %429 = vmatprep.mubr.f32.mxu0 %v357
  %430 = vmatmul.mubr.f32.gmra.mrb[0].mxu0 %v349
  %v431 = vpop.f32.mrb[0].mxu0
  %v432 = vadd.f32 0.0, %v431
  %v433 = vpop.f32.mrb[0].mxu0
  %434 = vdwg.mxu0
  %435 = vmatprep.subr.mxu0 %v344
  %436 = vmatpush1.xpose.msra.mxu0 %v343
  %437 = vmatprep.subr.mxu0 0.0
  %438 = vmatpush1.xpose.msra.mxu0 0.0
  %439 = vmatprep.subr.mxu0 0.0
  %440 = vmatpush1.xpose.msra.mxu0 0.0
  %441 = vmatprep.subr.mxu0 0.0
  %442 = vmatpush1.xpose.msra.mxu0 0.0
  %443 = vmatprep.subr.mxu0 0.0
  %444 = vmatpush1.xpose.msra.mxu0 0.0
  %445 = vmatprep.subr.mxu0 0.0
  %446 = vmatpush1.xpose.msra.mxu0 0.0
  %447 = vmatprep.subr.mxu0 0.0
  %448 = vmatpush1.xpose.msra.mxu0 0.0
  %449 = vmatprep.subr.mxu0 0.0
  %450 = vmatpush1.xpose.msra.mxu0 0.0
  %451 = vmatprep.subr.mxu0 0.0
  %452 = vmatpush1.xpose.msra.mxu0 0.0
  %453 = vmatprep.subr.mxu0 0.0
  %454 = vmatpush1.xpose.msra.mxu0 0.0
  %455 = vmatprep.subr.mxu0 0.0
  %456 = vmatpush1.xpose.msra.mxu0 0.0
  %457 = vmatprep.subr.mxu0 0.0
  %458 = vmatpush1.xpose.msra.mxu0 0.0
  %459 = vmatprep.subr.mxu0 0.0
  %460 = vmatpush1.xpose.msra.mxu0 0.0
  %461 = vmatprep.subr.mxu0 0.0
  %462 = vmatpush1.xpose.msra.mxu0 0.0
  %463 = vmatprep.subr.mxu0 0.0
  %464 = vmatpush1.xpose.msra.mxu0 0.0
  %465 = vmatprep.subr.mxu0 0.0
  %466 = vmatpush1.xpose.msra.mxu0 0.0
  %467 = vmatprep.subr.mxu0 0.0
  %468 = vmatpush1.xpose.msra.mxu0 0.0
  %469 = vmatprep.subr.mxu0 0.0
  %470 = vmatpush1.xpose.msra.mxu0 0.0
  %471 = vmatprep.subr.mxu0 0.0
  %472 = vmatpush1.xpose.msra.mxu0 0.0
  %473 = vmatprep.subr.mxu0 0.0
  %474 = vmatpush1.xpose.msra.mxu0 0.0
  %475 = vmatprep.subr.mxu0 0.0
  %476 = vmatpush1.xpose.msra.mxu0 0.0
  %477 = vmatprep.subr.mxu0 0.0
  %478 = vmatpush1.xpose.msra.mxu0 0.0
  %479 = vmatprep.subr.mxu0 0.0
  %480 = vmatpush1.xpose.msra.mxu0 0.0
  %481 = vmatprep.subr.mxu0 0.0
  %482 = vmatpush1.xpose.msra.mxu0 0.0
  %483 = vmatprep.subr.mxu0 0.0
  %484 = vmatpush1.xpose.msra.mxu0 0.0
  %485 = vmatprep.subr.mxu0 0.0
  %486 = vmatpush1.xpose.msra.mxu0 0.0
  %487 = vmatprep.subr.mxu0 0.0
  %488 = vmatpush1.xpose.msra.mxu0 0.0
  %489 = vmatprep.subr.mxu0 0.0
  %490 = vmatpush1.xpose.msra.mxu0 0.0
  %491 = vmatprep.subr.mxu0 0.0
  %492 = vmatpush1.xpose.msra.mxu0 0.0
  %493 = vmatprep.subr.mxu0 0.0
  %494 = vmatpush1.xpose.msra.mxu0 0.0
  %495 = vmatprep.subr.mxu0 0.0
  %496 = vmatpush1.xpose.msra.mxu0 0.0
  %497 = vmatprep.subr.mxu0 0.0
  %498 = vmatpush1.xpose.msra.mxu0 0.0
  %499 = vmatprep.mubr.f32.mxu0 %v358
  %500 = vmatmul.mubr.f32.gmra.mrb[0].mxu0 %v350
  %v501 = vpop.f32.mrb[0].mxu0
  %v502 = vadd.f32 %v432, %v501
  %v503 = vpop.f32.mrb[0].mxu0
  %504 = vdwg.mxu0
  %505 = vmatprep.subr.mxu0 %v346
  %506 = vmatpush1.xpose.msra.mxu0 %v345
  %507 = vmatprep.subr.mxu0 0.0
  %508 = vmatpush1.xpose.msra.mxu0 0.0
  %509 = vmatprep.subr.mxu0 0.0
  %510 = vmatpush1.xpose.msra.mxu0 0.0
  %511 = vmatprep.subr.mxu0 0.0
  %512 = vmatpush1.xpose.msra.mxu0 0.0
  %513 = vmatprep.subr.mxu0 0.0
  %514 = vmatpush1.xpose.msra.mxu0 0.0
  %515 = vmatprep.subr.mxu0 0.0
  %516 = vmatpush1.xpose.msra.mxu0 0.0
  %517 = vmatprep.subr.mxu0 0.0
  %518 = vmatpush1.xpose.msra.mxu0 0.0
  %519 = vmatprep.subr.mxu0 0.0
  %520 = vmatpush1.xpose.msra.mxu0 0.0
  %521 = vmatprep.subr.mxu0 0.0
  %522 = vmatpush1.xpose.msra.mxu0 0.0
  %523 = vmatprep.subr.mxu0 0.0
  %524 = vmatpush1.xpose.msra.mxu0 0.0
  %525 = vmatprep.subr.mxu0 0.0
  %526 = vmatpush1.xpose.msra.mxu0 0.0
  %527 = vmatprep.subr.mxu0 0.0
  %528 = vmatpush1.xpose.msra.mxu0 0.0
  %529 = vmatprep.subr.mxu0 0.0
  %530 = vmatpush1.xpose.msra.mxu0 0.0
  %531 = vmatprep.subr.mxu0 0.0
  %532 = vmatpush1.xpose.msra.mxu0 0.0
  %533 = vmatprep.subr.mxu0 0.0
  %534 = vmatpush1.xpose.msra.mxu0 0.0
  %535 = vmatprep.subr.mxu0 0.0
  %536 = vmatpush1.xpose.msra.mxu0 0.0
  %537 = vmatprep.subr.mxu0 0.0
  %538 = vmatpush1.xpose.msra.mxu0 0.0
  %539 = vmatprep.subr.mxu0 0.0
  %540 = vmatpush1.xpose.msra.mxu0 0.0
  %541 = vmatprep.subr.mxu0 0.0
  %542 = vmatpush1.xpose.msra.mxu0 0.0
  %543 = vmatprep.subr.mxu0 0.0
  %544 = vmatpush1.xpose.msra.mxu0 0.0
  %545 = vmatprep.subr.mxu0 0.0
  %546 = vmatpush1.xpose.msra.mxu0 0.0
  %547 = vmatprep.subr.mxu0 0.0
  %548 = vmatpush1.xpose.msra.mxu0 0.0
  %549 = vmatprep.subr.mxu0 0.0
  %550 = vmatpush1.xpose.msra.mxu0 0.0
  %551 = vmatprep.subr.mxu0 0.0
  %552 = vmatpush1.xpose.msra.mxu0 0.0
  %553 = vmatprep.subr.mxu0 0.0
  %554 = vmatpush1.xpose.msra.mxu0 0.0
  %555 = vmatprep.subr.mxu0 0.0
  %556 = vmatpush1.xpose.msra.mxu0 0.0
  %557 = vmatprep.subr.mxu0 0.0
  %558 = vmatpush1.xpose.msra.mxu0 0.0
  %559 = vmatprep.subr.mxu0 0.0
  %560 = vmatpush1.xpose.msra.mxu0 0.0
  %561 = vmatprep.subr.mxu0 0.0
  %562 = vmatpush1.xpose.msra.mxu0 0.0
  %563 = vmatprep.subr.mxu0 0.0
  %564 = vmatpush1.xpose.msra.mxu0 0.0
  %565 = vmatprep.subr.mxu0 0.0
  %566 = vmatpush1.xpose.msra.mxu0 0.0
  %567 = vmatprep.subr.mxu0 0.0
  %568 = vmatpush1.xpose.msra.mxu0 0.0
  %569 = vmatprep.mubr.f32.mxu0 %v359
  %570 = vmatmul.mubr.f32.gmra.mrb[0].mxu0 %v351
  %v571 = vpop.f32.mrb[0].mxu0
  %v572 = vadd.f32 %v502, %v571
  %v573 = vpop.f32.mrb[0].mxu0
  %574 = vdwg.mxu0
  %575 = vmatprep.subr.mxu0 %v348
  %576 = vmatpush1.xpose.msra.mxu0 %v347
  %577 = vmatprep.subr.mxu0 0.0
  %578 = vmatpush1.xpose.msra.mxu0 0.0
  %579 = vmatprep.subr.mxu0 0.0
  %580 = vmatpush1.xpose.msra.mxu0 0.0
  %581 = vmatprep.subr.mxu0 0.0
  %582 = vmatpush1.xpose.msra.mxu0 0.0
  %583 = vmatprep.subr.mxu0 0.0
  %584 = vmatpush1.xpose.msra.mxu0 0.0
  %585 = vmatprep.subr.mxu0 0.0
  %586 = vmatpush1.xpose.msra.mxu0 0.0
  %587 = vmatprep.subr.mxu0 0.0
  %588 = vmatpush1.xpose.msra.mxu0 0.0
  %589 = vmatprep.subr.mxu0 0.0
  %590 = vmatpush1.xpose.msra.mxu0 0.0
  %591 = vmatprep.subr.mxu0 0.0
  %592 = vmatpush1.xpose.msra.mxu0 0.0
  %593 = vmatprep.subr.mxu0 0.0
  %594 = vmatpush1.xpose.msra.mxu0 0.0
  %595 = vmatprep.subr.mxu0 0.0
  %596 = vmatpush1.xpose.msra.mxu0 0.0
  %597 = vmatprep.subr.mxu0 0.0
  %598 = vmatpush1.xpose.msra.mxu0 0.0
  %599 = vmatprep.subr.mxu0 0.0
  %600 = vmatpush1.xpose.msra.mxu0 0.0
  %601 = vmatprep.subr.mxu0 0.0
  %602 = vmatpush1.xpose.msra.mxu0 0.0
  %603 = vmatprep.subr.mxu0 0.0
  %604 = vmatpush1.xpose.msra.mxu0 0.0
  %605 = vmatprep.subr.mxu0 0.0
  %606 = vmatpush1.xpose.msra.mxu0 0.0
  %607 = vmatprep.subr.mxu0 0.0
  %608 = vmatpush1.xpose.msra.mxu0 0.0
  %609 = vmatprep.subr.mxu0 0.0
  %610 = vmatpush1.xpose.msra.mxu0 0.0
  %611 = vmatprep.subr.mxu0 0.0
  %612 = vmatpush1.xpose.msra.mxu0 0.0
  %613 = vmatprep.subr.mxu0 0.0
  %614 = vmatpush1.xpose.msra.mxu0 0.0
  %615 = vmatprep.subr.mxu0 0.0
  %616 = vmatpush1.xpose.msra.mxu0 0.0
  %617 = vmatprep.subr.mxu0 0.0
  %618 = vmatpush1.xpose.msra.mxu0 0.0
  %619 = vmatprep.subr.mxu0 0.0
  %620 = vmatpush1.xpose.msra.mxu0 0.0
  %621 = vmatprep.subr.mxu0 0.0
  %622 = vmatpush1.xpose.msra.mxu0 0.0
  %623 = vmatprep.subr.mxu0 0.0
  %624 = vmatpush1.xpose.msra.mxu0 0.0
  %625 = vmatprep.subr.mxu0 0.0
  %626 = vmatpush1.xpose.msra.mxu0 0.0
  %627 = vmatprep.subr.mxu0 0.0
  %628 = vmatpush1.xpose.msra.mxu0 0.0
  %629 = vmatprep.subr.mxu0 0.0
  %630 = vmatpush1.xpose.msra.mxu0 0.0
  %631 = vmatprep.subr.mxu0 0.0
  %632 = vmatpush1.xpose.msra.mxu0 0.0
  %633 = vmatprep.subr.mxu0 0.0
  %634 = vmatpush1.xpose.msra.mxu0 0.0
  %635 = vmatprep.subr.mxu0 0.0
  %636 = vmatpush1.xpose.msra.mxu0 0.0
  %637 = vmatprep.subr.mxu0 0.0
  %638 = vmatpush1.xpose.msra.mxu0 0.0
  %639 = vmatprep.mubr.f32.mxu0 %v360
  %640 = vmatmul.mubr.f32.gmra.mrb[0].mxu0 %v352
  %v641 = vpop.f32.mrb[0].mxu0
  %v642 = vadd.f32 %v572, %v641
  %v643 = vpop.f32.mrb[0].mxu0
  %644 = vdwg.mxu0
  %v645 = vld [vmem:[%s3] sm:$0xff]
  %v646 = vld [vmem:[%s4] sm:$0x1]
  %v647 = vlaneseq
  %v648 = vshrl.u32 %v647, 7
  %v649 = vsub.s32 0, %v648
  %v650 = vrot.slane %v646, %v649
  %vm651 = vcmask 64512
  %v653 = vsel %vm651, %v642, 0
  %655 = vmatprep.subr.mxu0 0.0
  %656 = vmatpush1.msra.mxu0 %v645
  %657 = vmatprep.subr.mxu0 0.0
  %658 = vmatpush1.msra.mxu0 0.0
  %659 = vmatprep.subr.mxu0 0.0
  %660 = vmatpush1.msra.mxu0 0.0
  %661 = vmatprep.subr.mxu0 0.0
  %662 = vmatpush1.msra.mxu0 0.0
  %663 = vmatprep.subr.mxu0 0.0
  %664 = vmatpush1.msra.mxu0 0.0
  %665 = vmatprep.subr.mxu0 0.0
  %666 = vmatpush1.msra.mxu0 0.0
  %667 = vmatprep.subr.mxu0 0.0
  %668 = vmatpush1.msra.mxu0 0.0
  %669 = vmatprep.subr.mxu0 0.0
  %670 = vmatpush1.msra.mxu0 0.0
  %671 = vmatprep.subr.mxu0 0.0
  %672 = vmatpush1.msra.mxu0 0.0
  %673 = vmatprep.subr.mxu0 0.0
  %674 = vmatpush1.msra.mxu0 0.0
  %675 = vmatprep.subr.mxu0 0.0
  %676 = vmatpush1.msra.mxu0 0.0
  %677 = vmatprep.subr.mxu0 0.0
  %678 = vmatpush1.msra.mxu0 0.0
  %679 = vmatprep.subr.mxu0 0.0
  %680 = vmatpush1.msra.mxu0 0.0
  %681 = vmatprep.subr.mxu0 0.0
  %682 = vmatpush1.msra.mxu0 0.0
  %683 = vmatprep.subr.mxu0 0.0
  %684 = vmatpush1.msra.mxu0 0.0
  %685 = vmatprep.subr.mxu0 0.0
  %686 = vmatpush1.msra.mxu0 0.0
  %687 = vmatprep.subr.mxu0 0.0
  %688 = vmatpush1.msra.mxu0 0.0
  %689 = vmatprep.subr.mxu0 0.0
  %690 = vmatpush1.msra.mxu0 0.0
  %691 = vmatprep.subr.mxu0 0.0
  %692 = vmatpush1.msra.mxu0 0.0
  %693 = vmatprep.subr.mxu0 0.0
  %694 = vmatpush1.msra.mxu0 0.0
  %695 = vmatprep.subr.mxu0 0.0
  %696 = vmatpush1.msra.mxu0 0.0
  %697 = vmatprep.subr.mxu0 0.0
  %698 = vmatpush1.msra.mxu0 0.0
  %699 = vmatprep.subr.mxu0 0.0
  %700 = vmatpush1.msra.mxu0 0.0
  %701 = vmatprep.subr.mxu0 0.0
  %702 = vmatpush1.msra.mxu0 0.0
  %703 = vmatprep.subr.mxu0 0.0
  %704 = vmatpush1.msra.mxu0 0.0
  %705 = vmatprep.subr.mxu0 0.0
  %706 = vmatpush1.msra.mxu0 0.0
  %707 = vmatprep.subr.mxu0 0.0
  %708 = vmatpush1.msra.mxu0 0.0
  %709 = vmatprep.subr.mxu0 0.0
  %710 = vmatpush1.msra.mxu0 0.0
  %711 = vmatprep.subr.mxu0 0.0
  %712 = vmatpush1.msra.mxu0 0.0
  %713 = vmatprep.subr.mxu0 0.0
  %714 = vmatpush1.msra.mxu0 0.0
  %715 = vmatprep.subr.mxu0 0.0
  %716 = vmatpush1.msra.mxu0 0.0
  %717 = vmatprep.subr.mxu0 0.0
  %718 = vmatpush1.msra.mxu0 0.0
  %719 = vmatprep.mubr.f32.mxu0 0.0
  %720 = vmatmul.mubr.f32.gmra.mrb[0].mxu0 %v653
  %v721 = vpop.f32.mrb[0].mxu0
  %v722 = vadd.f32 %v650, %v721
  %v723 = vpop.f32.mrb[0].mxu0
  %724 = vdwg.mxu0
  %v725 = vld [vmem:[%s3 + $0x8] sm:$0xff]
  %v726 = vld [vmem:[%s3 + $0x10] sm:$0xff]
  %v727 = vld [vmem:[%s3 + $0x18] sm:$0xff]
  %v728 = vld [vmem:[%s3 + $0x20] sm:$0xff]
  %v729 = vld [vmem:[%s3 + $0x28] sm:$0xff]
  %v730 = vld [vmem:[%s3 + $0x30] sm:$0xff]
  %v731 = vld [vmem:[%s3 + $0x38] sm:$0xff]
  %v732 = vld [vmem:[%s3 + $0x40] sm:$0xff]
  %v733 = vld [vmem:[%s3 + $0x48] sm:$0xff]
  %v734 = vld [vmem:[%s3 + $0x50] sm:$0xff]
  %v735 = vld [vmem:[%s3 + $0x58] sm:$0xff]
  %v736 = vld [vmem:[%s3 + $0x60] sm:$0xff]
  %v737 = vld [vmem:[%s3 + $0x68] sm:$0xff]
  %v738 = vld [vmem:[%s3 + $0x70] sm:$0xff]
  %v739 = vld [vmem:[%s3 + $0x78] sm:$0xff]
  %v740 = vld [vmem:[%s3 + $0x80] sm:$0xff]
  %v741 = vld [vmem:[%s3 + $0x88] sm:$0xff]
  %v742 = vld [vmem:[%s3 + $0x90] sm:$0xff]
  %v743 = vld [vmem:[%s3 + $0x98] sm:$0xff]
  %v744 = vld [vmem:[%s3 + $0xa0] sm:$0xff]
  %v745 = vld [vmem:[%s3 + $0xa8] sm:$0xff]
  %v746 = vld [vmem:[%s3 + $0xb0] sm:$0xff]
  %v747 = vld [vmem:[%s3 + $0xb8] sm:$0xff]
  %v748 = vld [vmem:[%s3 + $0xc0] sm:$0xff]
  %v749 = vld [vmem:[%s3 + $0xc8] sm:$0xff]
  %v750 = vld [vmem:[%s3 + $0xd0] sm:$0xff]
  %v751 = vld [vmem:[%s3 + $0xd8] sm:$0xff]
  %v752 = vld [vmem:[%s3 + $0xe0] sm:$0xff]
  %v753 = vld [vmem:[%s3 + $0xe8] sm:$0xff]
  %v754 = vld [vmem:[%s3 + $0xf0] sm:$0xff]
  %v755 = vld [vmem:[%s3 + $0xf8] sm:$0xff]
  %v756 = vld [vmem:[%s3 + $0x100] sm:$0xff]
  %v757 = vld [vmem:[%s3 + $0x108] sm:$0xff]
  %v758 = vld [vmem:[%s3 + $0x110] sm:$0xff]
  %v759 = vld [vmem:[%s3 + $0x118] sm:$0xff]
  %v760 = vld [vmem:[%s3 + $0x120] sm:$0xff]
  %v761 = vld [vmem:[%s3 + $0x128] sm:$0xff]
  %v762 = vld [vmem:[%s3 + $0x130] sm:$0xff]
  %v763 = vld [vmem:[%s3 + $0x138] sm:$0xff]
  %v764 = vld [vmem:[%s3 + $0x140] sm:$0xff]
  %v765 = vld [vmem:[%s3 + $0x148] sm:$0xff]
  %v766 = vld [vmem:[%s3 + $0x150] sm:$0xff]
  %v767 = vld [vmem:[%s3 + $0x158] sm:$0xff]
  %v768 = vld [vmem:[%s3 + $0x160] sm:$0xff]
  %v769 = vld [vmem:[%s3 + $0x168] sm:$0xff]
  %v770 = vld [vmem:[%s3 + $0x170] sm:$0xff]
  %v771 = vld [vmem:[%s3 + $0x178] sm:$0xff]
  %v772 = vld [vmem:[%s3 + $0x180] sm:$0xff]
  %v773 = vld [vmem:[%s4 + $0x1] sm:$0x1]
  %v774 = vld [vmem:[%s4 + $0x2] sm:$0x1]
  %v775 = vld [vmem:[%s4 + $0x3] sm:$0x1]
  %v776 = vld [vmem:[%s4 + $0x4] sm:$0x1]
  %v777 = vld [vmem:[%s4 + $0x5] sm:$0x1]
  %v778 = vld [vmem:[%s4 + $0x6] sm:$0x1]
  %v779 = vld [vmem:[%s4 + $0x7] sm:$0x1]
  %v780 = vlaneseq
  %v781 = vshrl.u32 %v780, 7
  %v782 = vsub.s32 0, %v781
  %v783 = vrot.slane %v773, %v782
  %784 = vmatprep.subr.mxu0 0.0
  %785 = vmatpush1.msra.mxu0 %v725
  %786 = vmatprep.subr.mxu0 0.0
  %787 = vmatpush1.msra.mxu0 %v726
  %788 = vmatprep.subr.mxu0 0.0
  %789 = vmatpush1.msra.mxu0 %v727
  %790 = vmatprep.subr.mxu0 0.0
  %791 = vmatpush1.msra.mxu0 %v728
  %792 = vmatprep.subr.mxu0 0.0
  %793 = vmatpush1.msra.mxu0 %v729
  %794 = vmatprep.subr.mxu0 0.0
  %795 = vmatpush1.msra.mxu0 %v730
  %796 = vmatprep.subr.mxu0 0.0
  %797 = vmatpush1.msra.mxu0 %v731
  %798 = vmatprep.subr.mxu0 0.0
  %799 = vmatpush1.msra.mxu0 %v732
  %800 = vmatprep.subr.mxu0 0.0
  %801 = vmatpush1.msra.mxu0 %v733
  %802 = vmatprep.subr.mxu0 0.0
  %803 = vmatpush1.msra.mxu0 %v734
  %804 = vmatprep.subr.mxu0 0.0
  %805 = vmatpush1.msra.mxu0 %v735
  %806 = vmatprep.subr.mxu0 0.0
  %807 = vmatpush1.msra.mxu0 %v736
  %808 = vmatprep.subr.mxu0 0.0
  %809 = vmatpush1.msra.mxu0 %v737
  %810 = vmatprep.subr.mxu0 0.0
  %811 = vmatpush1.msra.mxu0 %v738
  %812 = vmatprep.subr.mxu0 0.0
  %813 = vmatpush1.msra.mxu0 %v739
  %814 = vmatprep.subr.mxu0 0.0
  %815 = vmatpush1.msra.mxu0 %v740
  %816 = vmatprep.subr.mxu0 0.0
  %817 = vmatpush1.msra.mxu0 0.0
  %818 = vmatprep.subr.mxu0 0.0
  %819 = vmatpush1.msra.mxu0 0.0
  %820 = vmatprep.subr.mxu0 0.0
  %821 = vmatpush1.msra.mxu0 0.0
  %822 = vmatprep.subr.mxu0 0.0
  %823 = vmatpush1.msra.mxu0 0.0
  %824 = vmatprep.subr.mxu0 0.0
  %825 = vmatpush1.msra.mxu0 0.0
  %826 = vmatprep.subr.mxu0 0.0
  %827 = vmatpush1.msra.mxu0 0.0
  %828 = vmatprep.subr.mxu0 0.0
  %829 = vmatpush1.msra.mxu0 0.0
  %830 = vmatprep.subr.mxu0 0.0
  %831 = vmatpush1.msra.mxu0 0.0
  %832 = vmatprep.subr.mxu0 0.0
  %833 = vmatpush1.msra.mxu0 0.0
  %834 = vmatprep.subr.mxu0 0.0
  %835 = vmatpush1.msra.mxu0 0.0
  %836 = vmatprep.subr.mxu0 0.0
  %837 = vmatpush1.msra.mxu0 0.0
  %838 = vmatprep.subr.mxu0 0.0
  %839 = vmatpush1.msra.mxu0 0.0
  %840 = vmatprep.subr.mxu0 0.0
  %841 = vmatpush1.msra.mxu0 0.0
  %842 = vmatprep.subr.mxu0 0.0
  %843 = vmatpush1.msra.mxu0 0.0
  %844 = vmatprep.subr.mxu0 0.0
  %845 = vmatpush1.msra.mxu0 0.0
  %846 = vmatprep.subr.mxu0 0.0
  %847 = vmatpush1.msra.mxu0 0.0
  %848 = vmatprep.mubr.f32.mxu0 0.0
  %849 = vmatmul.mubr.f32.gmra.mrb[0].mxu0 %v722
  %v850 = vpop.f32.mrb[0].mxu0
  %v851 = vadd.f32 %v783, %v850
  %v852 = vpop.f32.mrb[0].mxu0
  %853 = vdwg.mxu0
  %v854 = vlaneseq
  %v855 = vshrl.u32 %v854, 7
  %v856 = vsub.s32 0, %v855
  %v857 = vrot.slane %v774, %v856
  %v858 = vmul.f32 %v851, %v857
  %v859 = vlaneseq
  %v860 = vshrl.u32 %v859, 7
  %v861 = vsub.s32 0, %v860
  %v862 = vrot.slane %v775, %v861
  %v863 = vadd.f32 %v858, %v862
  %v864 = vmax.f32 %v863, 0.0
  %v865 = vlaneseq
  %v866 = vshrl.u32 %v865, 7
  %v867 = vsub.s32 0, %v866
  %v868 = vrot.slane %v776, %v867
  %869 = vmatprep.subr.mxu0 0.0
  %870 = vmatpush1.msra.mxu0 %v741
  %871 = vmatprep.subr.mxu0 0.0
  %872 = vmatpush1.msra.mxu0 %v742
  %873 = vmatprep.subr.mxu0 0.0
  %874 = vmatpush1.msra.mxu0 %v743
  %875 = vmatprep.subr.mxu0 0.0
  %876 = vmatpush1.msra.mxu0 %v744
  %877 = vmatprep.subr.mxu0 0.0
  %878 = vmatpush1.msra.mxu0 %v745
  %879 = vmatprep.subr.mxu0 0.0
  %880 = vmatpush1.msra.mxu0 %v746
  %881 = vmatprep.subr.mxu0 0.0
  %882 = vmatpush1.msra.mxu0 %v747
  %883 = vmatprep.subr.mxu0 0.0
  %884 = vmatpush1.msra.mxu0 %v748
  %885 = vmatprep.subr.mxu0 0.0
  %886 = vmatpush1.msra.mxu0 %v749
  %887 = vmatprep.subr.mxu0 0.0
  %888 = vmatpush1.msra.mxu0 %v750
  %889 = vmatprep.subr.mxu0 0.0
  %890 = vmatpush1.msra.mxu0 %v751
  %891 = vmatprep.subr.mxu0 0.0
  %892 = vmatpush1.msra.mxu0 %v752
  %893 = vmatprep.subr.mxu0 0.0
  %894 = vmatpush1.msra.mxu0 %v753
  %895 = vmatprep.subr.mxu0 0.0
  %896 = vmatpush1.msra.mxu0 %v754
  %897 = vmatprep.subr.mxu0 0.0
  %898 = vmatpush1.msra.mxu0 %v755
  %899 = vmatprep.subr.mxu0 0.0
  %900 = vmatpush1.msra.mxu0 %v756
  %901 = vmatprep.subr.mxu0 0.0
  %902 = vmatpush1.msra.mxu0 0.0
  %903 = vmatprep.subr.mxu0 0.0
  %904 = vmatpush1.msra.mxu0 0.0
  %905 = vmatprep.subr.mxu0 0.0
  %906 = vmatpush1.msra.mxu0 0.0
  %907 = vmatprep.subr.mxu0 0.0
  %908 = vmatpush1.msra.mxu0 0.0
  %909 = vmatprep.subr.mxu0 0.0
  %910 = vmatpush1.msra.mxu0 0.0
  %911 = vmatprep.subr.mxu0 0.0
  %912 = vmatpush1.msra.mxu0 0.0
  %913 = vmatprep.subr.mxu0 0.0
  %914 = vmatpush1.msra.mxu0 0.0
  %915 = vmatprep.subr.mxu0 0.0
  %916 = vmatpush1.msra.mxu0 0.0
  %917 = vmatprep.subr.mxu0 0.0
  %918 = vmatpush1.msra.mxu0 0.0
  %919 = vmatprep.subr.mxu0 0.0
  %920 = vmatpush1.msra.mxu0 0.0
  %921 = vmatprep.subr.mxu0 0.0
  %922 = vmatpush1.msra.mxu0 0.0
  %923 = vmatprep.subr.mxu0 0.0
  %924 = vmatpush1.msra.mxu0 0.0
  %925 = vmatprep.subr.mxu0 0.0
  %926 = vmatpush1.msra.mxu0 0.0
  %927 = vmatprep.subr.mxu0 0.0
  %928 = vmatpush1.msra.mxu0 0.0
  %929 = vmatprep.subr.mxu0 0.0
  %930 = vmatpush1.msra.mxu0 0.0
  %931 = vmatprep.subr.mxu0 0.0
  %932 = vmatpush1.msra.mxu0 0.0
  %933 = vmatprep.mubr.f32.mxu0 0.0
  %934 = vmatmul.mubr.f32.gmra.mrb[0].mxu0 %v864
  %v935 = vpop.f32.mrb[0].mxu0
  %v936 = vadd.f32 %v868, %v935
  %v937 = vpop.f32.mrb[0].mxu0
  %938 = vdwg.mxu0
  %v939 = vlaneseq
  %v940 = vshrl.u32 %v939, 7
  %v941 = vsub.s32 0, %v940
  %v942 = vrot.slane %v777, %v941
  %v943 = vmul.f32 %v936, %v942
  %v944 = vlaneseq
  %v945 = vshrl.u32 %v944, 7
  %v946 = vsub.s32 0, %v945
  %v947 = vrot.slane %v778, %v946
  %v948 = vadd.f32 %v943, %v947
  %v949 = vmax.f32 %v948, 0.0
  %v950 = vlaneseq
  %v951 = vshrl.u32 %v950, 7
  %v952 = vsub.s32 0, %v951
  %v953 = vrot.slane %v779, %v952
  %954 = vmatprep.subr.mxu0 0.0
  %955 = vmatpush1.msra.mxu0 %v757
  %956 = vmatprep.subr.mxu0 0.0
  %957 = vmatpush1.msra.mxu0 %v758
  %958 = vmatprep.subr.mxu0 0.0
  %959 = vmatpush1.msra.mxu0 %v759
  %960 = vmatprep.subr.mxu0 0.0
  %961 = vmatpush1.msra.mxu0 %v760
  %962 = vmatprep.subr.mxu0 0.0
  %963 = vmatpush1.msra.mxu0 %v761
  %964 = vmatprep.subr.mxu0 0.0
  %965 = vmatpush1.msra.mxu0 %v762
  %966 = vmatprep.subr.mxu0 0.0
  %967 = vmatpush1.msra.mxu0 %v763
  %968 = vmatprep.subr.mxu0 0.0
  %969 = vmatpush1.msra.mxu0 %v764
  %970 = vmatprep.subr.mxu0 0.0
  %971 = vmatpush1.msra.mxu0 %v765
  %972 = vmatprep.subr.mxu0 0.0
  %973 = vmatpush1.msra.mxu0 %v766
  %974 = vmatprep.subr.mxu0 0.0
  %975 = vmatpush1.msra.mxu0 %v767
  %976 = vmatprep.subr.mxu0 0.0
  %977 = vmatpush1.msra.mxu0 %v768
  %978 = vmatprep.subr.mxu0 0.0
  %979 = vmatpush1.msra.mxu0 %v769
  %980 = vmatprep.subr.mxu0 0.0
  %981 = vmatpush1.msra.mxu0 %v770
  %982 = vmatprep.subr.mxu0 0.0
  %983 = vmatpush1.msra.mxu0 %v771
  %984 = vmatprep.subr.mxu0 0.0
  %985 = vmatpush1.msra.mxu0 %v772
  %986 = vmatprep.subr.mxu0 0.0
  %987 = vmatpush1.msra.mxu0 0.0
  %988 = vmatprep.subr.mxu0 0.0
  %989 = vmatpush1.msra.mxu0 0.0
  %990 = vmatprep.subr.mxu0 0.0
  %991 = vmatpush1.msra.mxu0 0.0
  %992 = vmatprep.subr.mxu0 0.0
  %993 = vmatpush1.msra.mxu0 0.0
  %994 = vmatprep.subr.mxu0 0.0
  %995 = vmatpush1.msra.mxu0 0.0
  %996 = vmatprep.subr.mxu0 0.0
  %997 = vmatpush1.msra.mxu0 0.0
  %998 = vmatprep.subr.mxu0 0.0
  %999 = vmatpush1.msra.mxu0 0.0
  %1000 = vmatprep.subr.mxu0 0.0
  %1001 = vmatpush1.msra.mxu0 0.0
  %1002 = vmatprep.subr.mxu0 0.0
  %1003 = vmatpush1.msra.mxu0 0.0
  %1004 = vmatprep.subr.mxu0 0.0
  %1005 = vmatpush1.msra.mxu0 0.0
  %1006 = vmatprep.subr.mxu0 0.0
  %1007 = vmatpush1.msra.mxu0 0.0
  %1008 = vmatprep.subr.mxu0 0.0
  %1009 = vmatpush1.msra.mxu0 0.0
  %1010 = vmatprep.subr.mxu0 0.0
  %1011 = vmatpush1.msra.mxu0 0.0
  %1012 = vmatprep.subr.mxu0 0.0
  %1013 = vmatpush1.msra.mxu0 0.0
  %1014 = vmatprep.subr.mxu0 0.0
  %1015 = vmatpush1.msra.mxu0 0.0
  %1016 = vmatprep.subr.mxu0 0.0
  %1017 = vmatpush1.msra.mxu0 0.0
  %1018 = vmatprep.mubr.f32.mxu0 0.0
  %1019 = vmatmul.mubr.f32.gmra.mrb[0].mxu0 %v949
  %v1020 = vpop.f32.mrb[0].mxu0
  %v1021 = vadd.f32 %v953, %v1020
  %v1022 = vpop.f32.mrb[0].mxu0
  %1023 = vdwg.mxu0
  %v1024 = vmax.f32 %v1021, 0.0
  %v1025 = vlaneseq
  %v1026 = vand.u32 %v1025, 127
  %vm1027 = vcmp.lt.s32.totalorder %v1026, 5
  %v1029 = vrot.slane %v1024, 2
  %v1031 = vsub.f32 %v1024, %v1029
  %v1032 = vadd.f32 %v1031, 1e-06
  %v1033 = vsel %vm1027, %v1032, 0.0
  %vm1034 = vcmask 1041408
  %v1035 = vsel %vm1034, %v1033, 0.0
  %v1036 = vmul.f32 %v1035, %v1035
  %1037 = vadd.xlane.f32.xlu0 %v1036
  %v1038 = vpop.xlane.xlu0 %1037
  %v1039 = vrsqrt.pop %v1038
  %v1040 = vmul.f32 %v1038, %v1039
  %vm1041 = vcmp.eq.f32.partialorder %v1038, inf
  %v1042 = vsel %vm1041, %v1038, %v1040
  %vm1043 = vcmp.eq.f32.partialorder %v1038, 0.0
  %v1044 = vand.u32 %v1038, 2147483648
  %v1045 = vsel %vm1043, %v1044, %v1042
  %1046 = vst [vmem:[%s5] sm:$0xff] %v1045
  // Predicated region
  $region22: #{siamese_forward.1} parent=0 // pred_check
    _
  $region23: #{siamese_forward.1} parent=0 // pred_check_branch
    %1048 = sbr.rel (0) target = $region25
  $region24: #{siamese_forward.1} parent=0 // pred_region
    _
  $region25: #{siamese_forward.1} parent=0 // pred_fallthru
    _
  // Predicated region
  $region26: #{siamese_forward.1} parent=0 // pred_check
    _
  $region27: #{siamese_forward.1} parent=0 // pred_check_branch
    %1050 = sbr.rel (0) target = $region29
  $region28: #{siamese_forward.1} parent=0 // pred_region
    _
  $region29: #{siamese_forward.1} parent=0 // pred_fallthru
    _

</llo_original>
